<compile_context>
chip_gen: v5e
topology: v5e:2x2
jax: 0.10.0
libtpu: 0.0.40
codegen_flags: <defaults>
</compile_context>

<pallas_src>
import jax
import jax.numpy as jnp
from jax.experimental import pallas as pl
from jax.experimental.pallas import tpu as pltpu


def _round_up(n, m):
    return ((n + m - 1) // m) * m


def _selector_kernel(x_ref, w1_ref, b1_ref, w2_ref, b2_ref, o_ref):
    # fc1: cast streamed f32 tile -> bf16 in-kernel, MXU matmul, f32 accumulate.
    x_bf = x_ref[...].astype(jnp.bfloat16)
    h = jnp.dot(x_bf, w1_ref[...],
                preferred_element_type=jnp.float32)          # (TB, 32)
    h = jnp.maximum(h + b1_ref[...], 0.0)                    # bias + ReLU (VPU)
    # Dropout(p=0.5): identity in eval mode.
    # TODO(synk): training-mode dropout (random mask + 1/(1-p) scaling) omitted.
    # fc2: tiny matmul, bf16 operands / f32 accumulation.
    o = jnp.dot(h.astype(jnp.bfloat16), w2_ref[...],
                preferred_element_type=jnp.float32)          # (TB, 2)
    o_ref[...] = (o + b2_ref[...]).astype(o_ref.dtype)


def selector_forward(x, w1, b1, w2, b2, *, block_b=2048):
    """x: (B, E) float32. w1: (E, 32), b1: (32,), w2: (32, 2), b2: (2,)."""
    B, E = x.shape
    H = w1.shape[1]
    O = w2.shape[1]

    # Small resident operands: bf16 weights for the MXU, f32 biases (row vecs).
    w1_bf = w1.astype(jnp.bfloat16)
    w2_bf = w2.astype(jnp.bfloat16)
    b1_2d = b1.reshape(1, H).astype(jnp.float32)
    b2_2d = b2.reshape(1, O).astype(jnp.float32)

    # Batch tile: multiple of 8 sublanes, capped at block_b, and capped at
    # ceil(B/2) so the grid has >= 2 steps whenever B allows (v7x megacore).
    tb = max(8, min(block_b, _round_up(-(-B // 2), 8)))
    grid = (pl.cdiv(B, tb),)   # ragged tail block is masked; no pad copy.

    cost = pl.CostEstimate(
        flops=2 * B * E * H + 2 * B * H * O,
        transcendentals=0,
        bytes_accessed=(B * E * x.dtype.itemsize          # x read
                        + B * O * x.dtype.itemsize        # out write
                        + E * H * 2 + H * O * 2           # bf16 weights
                        + (H + O) * 4),                   # biases
    )

    out = pl.pallas_call(
        _selector_kernel,
        out_shape=jax.ShapeDtypeStruct((B, O), x.dtype),
        grid=grid,
        in_specs=[
            pl.BlockSpec((tb, E), lambda i: (i, 0)),   # x: streamed over batch
            pl.BlockSpec((E, H), lambda i: (0, 0)),    # w1: VMEM resident
            pl.BlockSpec((1, H), lambda i: (0, 0)),    # b1: resident
            pl.BlockSpec((H, O), lambda i: (0, 0)),    # w2: resident
            pl.BlockSpec((1, O), lambda i: (0, 0)),    # b2: resident
        ],
        out_specs=pl.BlockSpec((tb, O), lambda i: (i, 0)),
        compiler_params=pltpu.CompilerParams(
            dimension_semantics=("parallel",),          # megacore on v7x
            vmem_limit_bytes=48 * 1024 * 1024,          # v5e headroom at TB=2048
        ),
        cost_estimate=cost,
    )(x, w1_bf, b1_2d, w2_bf, b2_2d)
    return out


def init_params(key, embedding_size=1024, hidden=32, out=2):
    """Deterministic init mimicking nn.Linear's U(-1/sqrt(fan_in), 1/sqrt(fan_in))."""
    k1, k2, k3, k4 = jax.random.split(key, 4)
    lim1 = 1.0 / jnp.sqrt(embedding_size)
    lim2 = 1.0 / jnp.sqrt(hidden)
    # Stored pre-transposed: (in, out)
    w1 = jax.random.uniform(k1, (embedding_size, hidden), jnp.float32, -lim1, lim1)
    b1 = jax.random.uniform(k2, (hidden,), jnp.float32, -lim1, lim1)
    w2 = jax.random.uniform(k3, (hidden, out), jnp.float32, -lim2, lim2)
    b2 = jax.random.uniform(k4, (out,), jnp.float32, -lim2, lim2)
    return w1, b1, w2, b2


def reference_forward_f32(x, w1, b1, w2, b2):
    h = jnp.maximum(x @ w1 + b1, 0.0)
    return h @ w2 + b2


def reference_forward_bf16(x, w1, b1, w2, b2):
    # Same bf16-operand / f32-accumulate recipe as the kernel.
    h = jnp.dot(x.astype(jnp.bfloat16), w1.astype(jnp.bfloat16),
                preferred_element_type=jnp.float32)
    h = jnp.maximum(h + b1, 0.0)
    return jnp.dot(h.astype(jnp.bfloat16), w2.astype(jnp.bfloat16),
                   preferred_element_type=jnp.float32) + b2


if __name__ == "__main__":
    key = jax.random.PRNGKey(0)
    kx, kp = jax.random.split(key)

    # Small shapes: batch not a multiple of the tile (exercises the ragged
    # cdiv grid + masked partial block and a 2-step grid), default embedding.
    B, E = 50, 1024
    x = jax.random.normal(kx, (B, E), dtype=jnp.float32)
    w1, b1, w2, b2 = init_params(kp, embedding_size=E)

    out = selector_forward(x, w1, b1, w2, b2)
    out = jax.block_until_ready(out)
    assert out.shape == (B, 2), out.shape
    assert jnp.all(jnp.isfinite(out)), "non-finite output"

    # Tight check vs. a reference using the same bf16-operand recipe.
    ref_bf = reference_forward_bf16(x, w1, b1, w2, b2)
    assert jnp.allclose(out, ref_bf, atol=2e-3, rtol=2e-3), (
        f"max abs err vs bf16 ref {jnp.max(jnp.abs(out - ref_bf))}"
    )

    # Loose check vs. the full-f32 PyTorch-equivalent forward.
    ref_f32 = reference_forward_f32(x, w1, b1, w2, b2)
    assert jnp.allclose(out, ref_f32, atol=5e-2, rtol=5e-2), (
        f"max abs err vs f32 ref {jnp.max(jnp.abs(out - ref_f32))}"
    )

    print("KERNEL_OK")
</pallas_src>

<mosaic_0001>
module attributes {stable_mosaic.version = 11 : i64} {
  func.func @_selector_kernel(%arg0: i32, %arg1: memref<32x1024xf32, #tpu.memory_space<vmem>>, %arg2: memref<1024x32xbf16, #tpu.memory_space<vmem>>, %arg3: memref<1x32xf32, #tpu.memory_space<vmem>>, %arg4: memref<32x2xbf16, #tpu.memory_space<vmem>>, %arg5: memref<1x2xf32, #tpu.memory_space<vmem>>, %arg6: memref<32x2xf32, #tpu.memory_space<vmem>>) attributes {dimension_semantics = [#tpu.dimension_semantics<parallel>], iteration_bounds = array<i64: 2>, scalar_prefetch = 0 : i64, scratch_operands = 0 : i64, tpu.core_type = #tpu.core_type<tc>, window_params = [{transform_indices = @transform_0, window_bounds = array<i64: 32, 1024>}, {pipeline_mode = #tpu.pipeline_mode<synchronous>, transform_indices = @transform_1, window_bounds = array<i64: 1024, 32>}, {pipeline_mode = #tpu.pipeline_mode<synchronous>, transform_indices = @transform_2, window_bounds = array<i64: 1, 32>}, {pipeline_mode = #tpu.pipeline_mode<synchronous>, transform_indices = @transform_3, window_bounds = array<i64: 32, 2>}, {pipeline_mode = #tpu.pipeline_mode<synchronous>, transform_indices = @transform_4, window_bounds = array<i64: 1, 2>}, {transform_indices = @transform_5, window_bounds = array<i64: 32, 2>}]} {
    %c0 = arith.constant 0 : index
    %c0_0 = arith.constant 0 : index
    %0 = vector.load %arg1[%c0, %c0_0] : memref<32x1024xf32, #tpu.memory_space<vmem>>, vector<32x1024xf32>
    %1 = arith.truncf %0 : vector<32x1024xf32> to vector<32x1024xbf16>
    %c0_1 = arith.constant 0 : index
    %c0_2 = arith.constant 0 : index
    %2 = vector.load %arg2[%c0_1, %c0_2] : memref<1024x32xbf16, #tpu.memory_space<vmem>>, vector<1024x32xbf16>
    %cst = arith.constant dense<0.000000e+00> : vector<32x32xf32>
    %3 = tpu.matmul %1, %2, %cst {dimension_numbers = #tpu.dot_dimension_numbers<[1], [0], [0], [1], [0, 0, 1, 1], [], []>} : vector<32x1024xbf16>, vector<1024x32xbf16>, vector<32x32xf32> -> vector<32x32xf32>
    %c0_3 = arith.constant 0 : index
    %c0_4 = arith.constant 0 : index
    %4 = vector.load %arg3[%c0_3, %c0_4] : memref<1x32xf32, #tpu.memory_space<vmem>>, vector<1x32xf32>
    %5 = vector.broadcast %4 : vector<1x32xf32> to vector<32x32xf32>
    %6 = arith.addf %3, %5 : vector<32x32xf32>
    %cst_5 = arith.constant 0.000000e+00 : f32
    %7 = vector.broadcast %cst_5 : f32 to vector<32x32xf32>
    %8 = arith.maximumf %6, %7 : vector<32x32xf32>
    %9 = arith.truncf %8 : vector<32x32xf32> to vector<32x32xbf16>
    %c0_6 = arith.constant 0 : index
    %c0_7 = arith.constant 0 : index
    %10 = vector.load %arg4[%c0_6, %c0_7] : memref<32x2xbf16, #tpu.memory_space<vmem>>, vector<32x2xbf16>
    %cst_8 = arith.constant dense<0.000000e+00> : vector<32x2xf32>
    %11 = tpu.matmul %9, %10, %cst_8 {dimension_numbers = #tpu.dot_dimension_numbers<[1], [0], [0], [1], [0, 0, 1, 1], [], []>} : vector<32x32xbf16>, vector<32x2xbf16>, vector<32x2xf32> -> vector<32x2xf32>
    %c0_9 = arith.constant 0 : index
    %c0_10 = arith.constant 0 : index
    %12 = vector.load %arg5[%c0_9, %c0_10] : memref<1x2xf32, #tpu.memory_space<vmem>>, vector<1x2xf32>
    %13 = vector.broadcast %12 : vector<1x2xf32> to vector<32x2xf32>
    %14 = arith.addf %11, %13 : vector<32x2xf32>
    %c0_11 = arith.constant 0 : index
    %c0_12 = arith.constant 0 : index
    %15 = vector.load %arg6[%c0_11, %c0_12] : memref<32x2xf32, #tpu.memory_space<vmem>>, vector<32x2xf32>
    tpu.vector_store %arg6[%c0_11, %c0_12], %14 {strides = array<i32>} : memref<32x2xf32, #tpu.memory_space<vmem>>, vector<32x2xf32>,
    return
  }
  func.func @transform_0(%arg0: i32) -> (i32, i32) {
    %c0_i32 = arith.constant 0 : i32
    %c0_i32_0 = arith.constant 0 : i32
    return %arg0, %c0_i32 : i32, i32
  }
  func.func @transform_1(%arg0: i32) -> (i32, i32) {
    %c0_i32 = arith.constant 0 : i32
    %c0_i32_0 = arith.constant 0 : i32
    %c0_i32_1 = arith.constant 0 : i32
    return %c0_i32, %c0_i32_0 : i32, i32
  }
  func.func @transform_2(%arg0: i32) -> (i32, i32) {
    %c0_i32 = arith.constant 0 : i32
    %c0_i32_0 = arith.constant 0 : i32
    %c0_i32_1 = arith.constant 0 : i32
    return %c0_i32, %c0_i32_0 : i32, i32
  }
  func.func @transform_3(%arg0: i32) -> (i32, i32) {
    %c0_i32 = arith.constant 0 : i32
    %c0_i32_0 = arith.constant 0 : i32
    %c0_i32_1 = arith.constant 0 : i32
    return %c0_i32, %c0_i32_0 : i32, i32
  }
  func.func @transform_4(%arg0: i32) -> (i32, i32) {
    %c0_i32 = arith.constant 0 : i32
    %c0_i32_0 = arith.constant 0 : i32
    %c0_i32_1 = arith.constant 0 : i32
    return %c0_i32, %c0_i32_0 : i32, i32
  }
  func.func @transform_5(%arg0: i32) -> (i32, i32) {
    %c0_i32 = arith.constant 0 : i32
    %c0_i32_0 = arith.constant 0 : i32
    return %arg0, %c0_i32 : i32, i32
  }
}

</mosaic_0001>

<llo_original>
// kernel: tpu_custom_call.1
$region0: #{tpu_custom_call.1}
  #allocation0 [shape = 'u32[]', space=smem, size = 0x4, offset = 0x4, fixed_abs, tag = 'smem constant byte address 0x4 - core index']
  #allocation1 [shape = 'u32[72,128]{1,0:T(1,128)}', space=vmem, size = 0x9000, scoped, tag = 'internal scratch']
  %s0 = inlined_call_operand.vmem [shape: f32[50,1024], index: 0, kind: input, shape index: {}]
  %s1 = inlined_call_operand.vmem [shape: bf16[1024,32], index: 1, kind: input, shape index: {}]
  %s2 = inlined_call_operand.vmem [shape: f32[1,32], index: 2, kind: input, shape index: {}]
  %s3 = inlined_call_operand.vmem [shape: bf16[32,2], index: 3, kind: input, shape index: {}]
  %s4 = inlined_call_operand.vmem [shape: f32[1,2], index: 4, kind: input, shape index: {}]
  %s5 = inlined_call_operand.vmem [shape: f32[50,2], index: 5, kind: output, shape index: {}]
  %s6 = sld [smem:[#allocation0]]
  $region101: #{tpu_custom_call.1} parent=0
    _
  %s8 = ssub.s32 1, %s6
  %s9 = scalar_select 0, %s8, %s6
  $region1: #{tpu_custom_call.1} parent=0
    #allocation2 [shape = 'u8[32768]{0}', space=vmem, size = 0x8000, scoped, tag = 'output window, operand 0']
    loop: start=0, step=1, limit=4
    $region2: #{tpu_custom_call.1} parent=1 // loop_pre_header
      _
    $region3: #{tpu_custom_call.1} parent=1 // loop_header
      %s11 = sphi 0, %s15
      %p12 = scmp.ge.s32.totalorder %s11, 4
      %s21 = sphi 0, %s23
      %s24 = sphi 0, %s21
      %s25 = sphi 0, %s24
      %s41 = sphi 0, %s25
      %s45 = sphi 0, %s45
      %s47 = sphi 0, %s45
      %s48 = sphi 0, %s47
      %s62 = sphi 0, %s48
      %s66 = sphi 0, %s66
      %s68 = sphi 0, %s66
      %s69 = sphi 0, %s68
      %s83 = sphi 0, %s69
      %s87 = sphi 0, %s87
      %s89 = sphi 0, %s87
      %s90 = sphi 0, %s89
      %s104 = sphi 0, %s90
      %s108 = sphi 0, %s108
      %s110 = sphi 0, %s108
      %s111 = sphi 0, %s110
      %s125 = sphi 0, %s111
      %s131 = sphi 0, %s133
      %s134 = sphi 0, %s131
      %s135 = sphi 0, %s134
      %s151 = sphi 0, %s135
    $region4: #{tpu_custom_call.1} parent=1 // loop_header_branch
      %14 = sbr.rel (%p12) target = $region8
    $region5: #{tpu_custom_call.1} parent=1 // loop_body
      %s16 = ssub.s32 %s11, 1
      %s17 = ssub.s32 %s11, 2
      %s18 = sadd.s32 %s11, 1
      %s19 = ssub.s32 %s11, %s18
      %p20 = scmp.eq.s32.totalorder %s19, 0
      %s22 = sadd.s32 %s21, 1
      %s23 = scalar_select %p20, %s21, %s22
      %p26 = pneg %p20
      %p27 = scmp.eq.s32.totalorder %s11, 1
      %p28 = por %p26, %p27
      %p29 = scmp.ne.s32.totalorder %s21, %s24
      %p30 = scmp.eq.s32.totalorder %s11, 0
      %p31 = por %p29, %p30
      %p32 = scmp.ne.s32.totalorder %s21, %s24
      %p33 = scmp.eq.s32.totalorder %s16, 1
      %p34 = por %p32, %p33
      %p35 = scmp.ne.s32.totalorder %s24, %s25
      %p36 = scmp.eq.s32.totalorder %s16, 0
      %p37 = por %p35, %p36
      %p38 = scmp.ne.s32.totalorder %s24, %s25
      %p39 = scmp.eq.s32.totalorder %s17, 1
      %p40 = por %p38, %p39
      %p42 = scmp.ne.s32.totalorder %s25, %s41
      %p43 = scmp.eq.s32.totalorder %s17, 0
      %p44 = por %p42, %p43
      %s46 = sadd.s32 %s45, 1
      %p49 = scmp.eq.s32.totalorder %s11, 1
      %p50 = scmp.ne.s32.totalorder %s45, %s47
      %p51 = scmp.eq.s32.totalorder %s11, 0
      %p52 = por %p50, %p51
      %p53 = scmp.ne.s32.totalorder %s45, %s47
      %p54 = scmp.eq.s32.totalorder %s16, 1
      %p55 = por %p53, %p54
      %p56 = scmp.ne.s32.totalorder %s47, %s48
      %p57 = scmp.eq.s32.totalorder %s16, 0
      %p58 = por %p56, %p57
      %p59 = scmp.ne.s32.totalorder %s47, %s48
      %p60 = scmp.eq.s32.totalorder %s17, 1
      %p61 = por %p59, %p60
      %p63 = scmp.ne.s32.totalorder %s48, %s62
      %p64 = scmp.eq.s32.totalorder %s17, 0
      %p65 = por %p63, %p64
      %s67 = sadd.s32 %s66, 1
      %p70 = scmp.eq.s32.totalorder %s11, 1
      %p71 = scmp.ne.s32.totalorder %s66, %s68
      %p72 = scmp.eq.s32.totalorder %s11, 0
      %p73 = por %p71, %p72
      %p74 = scmp.ne.s32.totalorder %s66, %s68
      %p75 = scmp.eq.s32.totalorder %s16, 1
      %p76 = por %p74, %p75
      %p77 = scmp.ne.s32.totalorder %s68, %s69
      %p78 = scmp.eq.s32.totalorder %s16, 0
      %p79 = por %p77, %p78
      %p80 = scmp.ne.s32.totalorder %s68, %s69
      %p81 = scmp.eq.s32.totalorder %s17, 1
      %p82 = por %p80, %p81
      %p84 = scmp.ne.s32.totalorder %s69, %s83
      %p85 = scmp.eq.s32.totalorder %s17, 0
      %p86 = por %p84, %p85
      %s88 = sadd.s32 %s87, 1
      %p91 = scmp.eq.s32.totalorder %s11, 1
      %p92 = scmp.ne.s32.totalorder %s87, %s89
      %p93 = scmp.eq.s32.totalorder %s11, 0
      %p94 = por %p92, %p93
      %p95 = scmp.ne.s32.totalorder %s87, %s89
      %p96 = scmp.eq.s32.totalorder %s16, 1
      %p97 = por %p95, %p96
      %p98 = scmp.ne.s32.totalorder %s89, %s90
      %p99 = scmp.eq.s32.totalorder %s16, 0
      %p100 = por %p98, %p99
      %p101 = scmp.ne.s32.totalorder %s89, %s90
      %p102 = scmp.eq.s32.totalorder %s17, 1
      %p103 = por %p101, %p102
      %p105 = scmp.ne.s32.totalorder %s90, %s104
      %p106 = scmp.eq.s32.totalorder %s17, 0
      %p107 = por %p105, %p106
      %s109 = sadd.s32 %s108, 1
      %p112 = scmp.eq.s32.totalorder %s11, 1
      %p113 = scmp.ne.s32.totalorder %s108, %s110
      %p114 = scmp.eq.s32.totalorder %s11, 0
      %p115 = por %p113, %p114
      %p116 = scmp.ne.s32.totalorder %s108, %s110
      %p117 = scmp.eq.s32.totalorder %s16, 1
      %p118 = por %p116, %p117
      %p119 = scmp.ne.s32.totalorder %s110, %s111
      %p120 = scmp.eq.s32.totalorder %s16, 0
      %p121 = por %p119, %p120
      %p122 = scmp.ne.s32.totalorder %s110, %s111
      %p123 = scmp.eq.s32.totalorder %s17, 1
      %p124 = por %p122, %p123
      %p126 = scmp.ne.s32.totalorder %s111, %s125
      %p127 = scmp.eq.s32.totalorder %s17, 0
      %p128 = por %p126, %p127
      %s129 = ssub.s32 %s11, %s18
      %p130 = scmp.eq.s32.totalorder %s129, 0
      %s132 = sadd.s32 %s131, 1
      %s133 = scalar_select %p130, %s131, %s132
      %p136 = pneg %p130
      %p137 = scmp.eq.s32.totalorder %s11, 1
      %p138 = por %p136, %p137
      %p139 = scmp.ne.s32.totalorder %s131, %s134
      %p140 = scmp.eq.s32.totalorder %s11, 0
      %p141 = por %p139, %p140
      %p142 = scmp.ne.s32.totalorder %s131, %s134
      %p143 = scmp.eq.s32.totalorder %s16, 1
      %p144 = por %p142, %p143
      %p145 = scmp.ne.s32.totalorder %s134, %s135
      %p146 = scmp.eq.s32.totalorder %s16, 0
      %p147 = por %p145, %p146
      %p148 = scmp.ne.s32.totalorder %s134, %s135
      %p149 = scmp.eq.s32.totalorder %s17, 1
      %p150 = por %p148, %p149
      %p152 = scmp.ne.s32.totalorder %s135, %s151
      %p153 = scmp.eq.s32.totalorder %s17, 0
      %p154 = por %p152, %p153
      %p155 = scmp.le.s32.totalorder 1, %s11
      %p156 = scmp.lt.s32.totalorder %s11, 3
      %p157 = pnand %p155, %p156
      %p158 = pneg %p157
      // Predicated region
      $region9: #{tpu_custom_call.1} parent=5 // pred_check
        _
      $region10: #{tpu_custom_call.1} parent=5 // pred_check_branch
        %160 = sbr.rel (%p157) target = $region12
      $region11: #{tpu_custom_call.1} parent=5 // pred_region
        %s161 = ssub.s32 %s11, 1
        // Predicated region
        $region13: #{tpu_custom_call.1} parent=11 // pred_check
          %p162 = pneg %p58
        $region14: #{tpu_custom_call.1} parent=11 // pred_check_branch
          %164 = sbr.rel (%p162) target = $region16
        $region15: #{tpu_custom_call.1} parent=11 // pred_region
          _
        $region16: #{tpu_custom_call.1} parent=11 // pred_fallthru
          _
        // Predicated region
        $region17: #{tpu_custom_call.1} parent=11 // pred_check
          %p165 = pneg %p79
        $region18: #{tpu_custom_call.1} parent=11 // pred_check_branch
          %167 = sbr.rel (%p165) target = $region20
        $region19: #{tpu_custom_call.1} parent=11 // pred_region
          _
        $region20: #{tpu_custom_call.1} parent=11 // pred_fallthru
          _
        // Predicated region
        $region21: #{tpu_custom_call.1} parent=11 // pred_check
          %p168 = pneg %p100
        $region22: #{tpu_custom_call.1} parent=11 // pred_check_branch
          %170 = sbr.rel (%p168) target = $region24
        $region23: #{tpu_custom_call.1} parent=11 // pred_region
          _
        $region24: #{tpu_custom_call.1} parent=11 // pred_fallthru
          _
        // Predicated region
        $region25: #{tpu_custom_call.1} parent=11 // pred_check
          %p171 = pneg %p121
        $region26: #{tpu_custom_call.1} parent=11 // pred_check_branch
          %173 = sbr.rel (%p171) target = $region28
        $region27: #{tpu_custom_call.1} parent=11 // pred_region
          _
        $region28: #{tpu_custom_call.1} parent=11 // pred_fallthru
          _
      $region12: #{tpu_custom_call.1} parent=5 // pred_fallthru
        _
      %p174 = scmp.lt.s32.totalorder %s11, 2
      // Predicated region
      $region29: #{tpu_custom_call.1} parent=5 // pred_check
        %p175 = pneg %p174
      $region30: #{tpu_custom_call.1} parent=5 // pred_check_branch
        %177 = sbr.rel (%p175) target = $region32
      $region31: #{tpu_custom_call.1} parent=5 // pred_region
        // Predicated region
        $region33: #{tpu_custom_call.1} parent=31 // pred_check
          %p178 = pneg %p31
        $region34: #{tpu_custom_call.1} parent=31 // pred_check_branch
          %180 = sbr.rel (%p178) target = $region36
        $region35: #{tpu_custom_call.1} parent=31 // pred_region
          %s181 = smul.u32 4, %s11
          %s182 = ssub.s32 7, %s181
          %p183 = scmp.lt.s32.totalorder %s182, 4
          %s184 = scalar_select %p183, %s182, 4
          %s185 = smul.u32 8, %s184
          %s186 = smul.u32 %s185, 8
          %p187 = scmp.lt.s32.totalorder %s181, 6
          %s188 = scalar_select %p187, %s181, 6
          %s189 = smul.addr %s188, 8
          %s190 = smul.addr %s189, 8
          %s191 = scalar_lea.vmem %s0, %s190
          %s192 = smul.u32 4, %s11
          %s193 = ssub.s32 7, %s192
          %p194 = scmp.lt.s32.totalorder %s193, 4
          %s195 = scalar_select %p194, %s193, 4
          %s196 = smul.u32 8, %s195
          %s197 = smul.u32 %s196, 8
        $region36: #{tpu_custom_call.1} parent=31 // pred_fallthru
          _
      $region32: #{tpu_custom_call.1} parent=5 // pred_fallthru
        _
      %p198 = scmp.le.s32.totalorder 1, %s11
      %p199 = scmp.lt.s32.totalorder %s11, 3
      %p200 = pnand %p198, %p199
      %p201 = pneg %p200
      // Predicated region
      $region37: #{tpu_custom_call.1} parent=5 // pred_check
        _
      $region38: #{tpu_custom_call.1} parent=5 // pred_check_branch
        %203 = sbr.rel (%p200) target = $region40
      $region39: #{tpu_custom_call.1} parent=5 // pred_region
        %s204 = ssub.s32 %s11, 1
        %s205 = smul.u32 4, %s16
        %s206 = ssub.s32 7, %s205
        %p207 = scmp.lt.s32.totalorder %s206, 4
        %s208 = scalar_select %p207, %s206, 4
        %s209 = smul.u32 8, %s208
        %s210 = smul.u32 %s209, 8
        %p211 = scmp.lt.s32.totalorder %s205, 6
        %s212 = scalar_select %p211, %s205, 6
        %s213 = smul.addr %s212, 8
        %s214 = smul.addr %s213, 8
        %s215 = scalar_lea.vmem %s0, %s214
        %p216 = pneg %p37
        %p217 = pneg %p34
        %p218 = pneg %p58
        %p219 = pneg %p55
        %p220 = pneg %p79
        %p221 = pneg %p76
        %p222 = pneg %p100
        %p223 = pneg %p97
        %p224 = pneg %p121
        %p225 = pneg %p118
        %p226 = pneg %p147
        %p227 = pneg %p144
        %s228 = sand.u32 %s134, 1
        %s229 = sand.u32 %s134, 1
        %s230 = smul.addr %s229, 32
        %s231 = scalar_lea.vmem [#allocation2], %s230
        %s232 = smul.u32 4, %s16
        %s233 = ssub.s32 7, %s232
        %p234 = scmp.lt.s32.totalorder %s233, 4
        %s235 = scalar_select %p234, %s233, 4
        %s236 = smul.u32 8, %s235
        %s237 = smul.u32 %s236, 8
        %p238 = scmp.lt.s32.totalorder %s232, 6
        %s239 = scalar_select %p238, %s232, 6
        %s240 = smul.addr %s239, 8
        %s241 = smul.addr %s240, 8
        %s242 = scalar_lea.vmem %s0, %s241
        %s243 = smul.u32 4, %s16
        %s244 = ssub.s32 7, %s243
        %p245 = scmp.lt.s32.totalorder %s244, 4
        %s246 = scalar_select %p245, %s244, 4
        %s247 = smul.u32 8, %s246
        %s248 = smul.u32 %s247, 8
        %s249 = smul.u32 4, %s16
        %s250 = ssub.s32 7, %s249
        %p251 = scmp.lt.s32.totalorder %s250, 4
        %s252 = scalar_select %p251, %s250, 4
        %s253 = smul.u32 8, %s252
        %v255 = vld [vmem:[%s242] sm:$0xff]
        %v256 = vld [vmem:[%s242 + $0x8] sm:$0xff]
        %v257 = vld [vmem:[%s242 + $0x10] sm:$0xff]
        %v258 = vld [vmem:[%s242 + $0x18] sm:$0xff]
        %v259 = vld [vmem:[%s242 + $0x20] sm:$0xff]
        %v260 = vld [vmem:[%s242 + $0x28] sm:$0xff]
        %v261 = vld [vmem:[%s242 + $0x30] sm:$0xff]
        %v262 = vld [vmem:[%s242 + $0x38] sm:$0xff]
        %v263 = vld [vmem:[%s242 + $0x40] sm:$0xff]
        %v264 = vld [vmem:[%s242 + $0x48] sm:$0xff]
        %v265 = vld [vmem:[%s242 + $0x50] sm:$0xff]
        %v266 = vld [vmem:[%s242 + $0x58] sm:$0xff]
        %v267 = vld [vmem:[%s242 + $0x60] sm:$0xff]
        %v268 = vld [vmem:[%s242 + $0x68] sm:$0xff]
        %v269 = vld [vmem:[%s242 + $0x70] sm:$0xff]
        %v270 = vld [vmem:[%s242 + $0x78] sm:$0xff]
        %v271 = vld [vmem:[%s242 + $0x80] sm:$0xff]
        %v272 = vld [vmem:[%s242 + $0x88] sm:$0xff]
        %v273 = vld [vmem:[%s242 + $0x90] sm:$0xff]
        %v274 = vld [vmem:[%s242 + $0x98] sm:$0xff]
        %v275 = vld [vmem:[%s242 + $0xa0] sm:$0xff]
        %v276 = vld [vmem:[%s242 + $0xa8] sm:$0xff]
        %v277 = vld [vmem:[%s242 + $0xb0] sm:$0xff]
        %v278 = vld [vmem:[%s242 + $0xb8] sm:$0xff]
        %v279 = vld [vmem:[%s242 + $0xc0] sm:$0xff]
        %v280 = vld [vmem:[%s242 + $0xc8] sm:$0xff]
        %v281 = vld [vmem:[%s242 + $0xd0] sm:$0xff]
        %v282 = vld [vmem:[%s242 + $0xd8] sm:$0xff]
        %v283 = vld [vmem:[%s242 + $0xe0] sm:$0xff]
        %v284 = vld [vmem:[%s242 + $0xe8] sm:$0xff]
        %v285 = vld [vmem:[%s242 + $0xf0] sm:$0xff]
        %v286 = vld [vmem:[%s242 + $0xf8] sm:$0xff]
        %v287 = vpack.c.bf16 %v263, %v255
        %v288 = vpack.c.bf16 %v264, %v256
        %v289 = vpack.c.bf16 %v265, %v257
        %v290 = vpack.c.bf16 %v266, %v258
        %v291 = vpack.c.bf16 %v267, %v259
        %v292 = vpack.c.bf16 %v268, %v260
        %v293 = vpack.c.bf16 %v269, %v261
        %v294 = vpack.c.bf16 %v270, %v262
        %v295 = vpack.c.bf16 %v279, %v271
        %v296 = vpack.c.bf16 %v280, %v272
        %v297 = vpack.c.bf16 %v281, %v273
        %v298 = vpack.c.bf16 %v282, %v274
        %v299 = vpack.c.bf16 %v283, %v275
        %v300 = vpack.c.bf16 %v284, %v276
        %v301 = vpack.c.bf16 %v285, %v277
        %v302 = vpack.c.bf16 %v286, %v278
        %v303 = vld [vmem:[%s1] sm:$0xf]
        %v304 = vld [vmem:[%s1 + $0x4] sm:$0xf]
        %v305 = vld [vmem:[%s1 + $0x8] sm:$0xf]
        %v306 = vld [vmem:[%s1 + $0xc] sm:$0xf]
        %v307 = vld [vmem:[%s1 + $0x10] sm:$0xf]
        %v308 = vld [vmem:[%s1 + $0x14] sm:$0xf]
        %v309 = vld [vmem:[%s1 + $0x18] sm:$0xf]
        %v310 = vld [vmem:[%s1 + $0x1c] sm:$0xf]
        %v311 = vld [vmem:[%s1 + $0x20] sm:$0xf]
        %v312 = vld [vmem:[%s1 + $0x24] sm:$0xf]
        %v313 = vld [vmem:[%s1 + $0x28] sm:$0xf]
        %v314 = vld [vmem:[%s1 + $0x2c] sm:$0xf]
        %v315 = vld [vmem:[%s1 + $0x30] sm:$0xf]
        %v316 = vld [vmem:[%s1 + $0x34] sm:$0xf]
        %v317 = vld [vmem:[%s1 + $0x38] sm:$0xf]
        %v318 = vld [vmem:[%s1 + $0x3c] sm:$0xf]
        %v319 = vld [vmem:[%s1 + $0x40] sm:$0xf]
        %v320 = vld [vmem:[%s1 + $0x44] sm:$0xf]
        %v321 = vld [vmem:[%s1 + $0x48] sm:$0xf]
        %v322 = vld [vmem:[%s1 + $0x4c] sm:$0xf]
        %v323 = vld [vmem:[%s1 + $0x50] sm:$0xf]
        %v324 = vld [vmem:[%s1 + $0x54] sm:$0xf]
        %v325 = vld [vmem:[%s1 + $0x58] sm:$0xf]
        %v326 = vld [vmem:[%s1 + $0x5c] sm:$0xf]
        %v327 = vld [vmem:[%s1 + $0x60] sm:$0xf]
        %v328 = vld [vmem:[%s1 + $0x64] sm:$0xf]
        %v329 = vld [vmem:[%s1 + $0x68] sm:$0xf]
        %v330 = vld [vmem:[%s1 + $0x6c] sm:$0xf]
        %v331 = vld [vmem:[%s1 + $0x70] sm:$0xf]
        %v332 = vld [vmem:[%s1 + $0x74] sm:$0xf]
        %v333 = vld [vmem:[%s1 + $0x78] sm:$0xf]
        %v334 = vld [vmem:[%s1 + $0x7c] sm:$0xf]
        %v335 = vld [vmem:[%s1 + $0x80] sm:$0xf]
        %v336 = vld [vmem:[%s1 + $0x84] sm:$0xf]
        %v337 = vld [vmem:[%s1 + $0x88] sm:$0xf]
        %v338 = vld [vmem:[%s1 + $0x8c] sm:$0xf]
        %v339 = vld [vmem:[%s1 + $0x90] sm:$0xf]
        %v340 = vld [vmem:[%s1 + $0x94] sm:$0xf]
        %v341 = vld [vmem:[%s1 + $0x98] sm:$0xf]
        %v342 = vld [vmem:[%s1 + $0x9c] sm:$0xf]
        %v343 = vld [vmem:[%s1 + $0xa0] sm:$0xf]
        %v344 = vld [vmem:[%s1 + $0xa4] sm:$0xf]
        %v345 = vld [vmem:[%s1 + $0xa8] sm:$0xf]
        %v346 = vld [vmem:[%s1 + $0xac] sm:$0xf]
        %v347 = vld [vmem:[%s1 + $0xb0] sm:$0xf]
        %v348 = vld [vmem:[%s1 + $0xb4] sm:$0xf]
        %v349 = vld [vmem:[%s1 + $0xb8] sm:$0xf]
        %v350 = vld [vmem:[%s1 + $0xbc] sm:$0xf]
        %v351 = vld [vmem:[%s1 + $0xc0] sm:$0xf]
        %v352 = vld [vmem:[%s1 + $0xc4] sm:$0xf]
        %v353 = vld [vmem:[%s1 + $0xc8] sm:$0xf]
        %v354 = vld [vmem:[%s1 + $0xcc] sm:$0xf]
        %v355 = vld [vmem:[%s1 + $0xd0] sm:$0xf]
        %v356 = vld [vmem:[%s1 + $0xd4] sm:$0xf]
        %v357 = vld [vmem:[%s1 + $0xd8] sm:$0xf]
        %v358 = vld [vmem:[%s1 + $0xdc] sm:$0xf]
        %v359 = vld [vmem:[%s1 + $0xe0] sm:$0xf]
        %v360 = vld [vmem:[%s1 + $0xe4] sm:$0xf]
        %v361 = vld [vmem:[%s1 + $0xe8] sm:$0xf]
        %v362 = vld [vmem:[%s1 + $0xec] sm:$0xf]
        %v363 = vld [vmem:[%s1 + $0xf0] sm:$0xf]
        %v364 = vld [vmem:[%s1 + $0xf4] sm:$0xf]
        %v365 = vld [vmem:[%s1 + $0xf8] sm:$0xf]
        %v366 = vld [vmem:[%s1 + $0xfc] sm:$0xf]
        %v367 = vld [vmem:[%s1 + $0x100] sm:$0xf]
        %v368 = vld [vmem:[%s1 + $0x104] sm:$0xf]
        %v369 = vld [vmem:[%s1 + $0x108] sm:$0xf]
        %v370 = vld [vmem:[%s1 + $0x10c] sm:$0xf]
        %v371 = vld [vmem:[%s1 + $0x110] sm:$0xf]
        %v372 = vld [vmem:[%s1 + $0x114] sm:$0xf]
        %v373 = vld [vmem:[%s1 + $0x118] sm:$0xf]
        %v374 = vld [vmem:[%s1 + $0x11c] sm:$0xf]
        %v375 = vld [vmem:[%s1 + $0x120] sm:$0xf]
        %v376 = vld [vmem:[%s1 + $0x124] sm:$0xf]
        %v377 = vld [vmem:[%s1 + $0x128] sm:$0xf]
        %v378 = vld [vmem:[%s1 + $0x12c] sm:$0xf]
        %v379 = vld [vmem:[%s1 + $0x130] sm:$0xf]
        %v380 = vld [vmem:[%s1 + $0x134] sm:$0xf]
        %v381 = vld [vmem:[%s1 + $0x138] sm:$0xf]
        %v382 = vld [vmem:[%s1 + $0x13c] sm:$0xf]
        %v383 = vld [vmem:[%s1 + $0x140] sm:$0xf]
        %v384 = vld [vmem:[%s1 + $0x144] sm:$0xf]
        %v385 = vld [vmem:[%s1 + $0x148] sm:$0xf]
        %v386 = vld [vmem:[%s1 + $0x14c] sm:$0xf]
        %v387 = vld [vmem:[%s1 + $0x150] sm:$0xf]
        %v388 = vld [vmem:[%s1 + $0x154] sm:$0xf]
        %v389 = vld [vmem:[%s1 + $0x158] sm:$0xf]
        %v390 = vld [vmem:[%s1 + $0x15c] sm:$0xf]
        %v391 = vld [vmem:[%s1 + $0x160] sm:$0xf]
        %v392 = vld [vmem:[%s1 + $0x164] sm:$0xf]
        %v393 = vld [vmem:[%s1 + $0x168] sm:$0xf]
        %v394 = vld [vmem:[%s1 + $0x16c] sm:$0xf]
        %v395 = vld [vmem:[%s1 + $0x170] sm:$0xf]
        %v396 = vld [vmem:[%s1 + $0x174] sm:$0xf]
        %v397 = vld [vmem:[%s1 + $0x178] sm:$0xf]
        %v398 = vld [vmem:[%s1 + $0x17c] sm:$0xf]
        %v399 = vld [vmem:[%s1 + $0x180] sm:$0xf]
        %v400 = vld [vmem:[%s1 + $0x184] sm:$0xf]
        %v401 = vld [vmem:[%s1 + $0x188] sm:$0xf]
        %v402 = vld [vmem:[%s1 + $0x18c] sm:$0xf]
        %v403 = vld [vmem:[%s1 + $0x190] sm:$0xf]
        %v404 = vld [vmem:[%s1 + $0x194] sm:$0xf]
        %v405 = vld [vmem:[%s1 + $0x198] sm:$0xf]
        %v406 = vld [vmem:[%s1 + $0x19c] sm:$0xf]
        %v407 = vld [vmem:[%s1 + $0x1a0] sm:$0xf]
        %v408 = vld [vmem:[%s1 + $0x1a4] sm:$0xf]
        %v409 = vld [vmem:[%s1 + $0x1a8] sm:$0xf]
        %v410 = vld [vmem:[%s1 + $0x1ac] sm:$0xf]
        %v411 = vld [vmem:[%s1 + $0x1b0] sm:$0xf]
        %v412 = vld [vmem:[%s1 + $0x1b4] sm:$0xf]
        %v413 = vld [vmem:[%s1 + $0x1b8] sm:$0xf]
        %v414 = vld [vmem:[%s1 + $0x1bc] sm:$0xf]
        %v415 = vld [vmem:[%s1 + $0x1c0] sm:$0xf]
        %v416 = vld [vmem:[%s1 + $0x1c4] sm:$0xf]
        %v417 = vld [vmem:[%s1 + $0x1c8] sm:$0xf]
        %v418 = vld [vmem:[%s1 + $0x1cc] sm:$0xf]
        %v419 = vld [vmem:[%s1 + $0x1d0] sm:$0xf]
        %v420 = vld [vmem:[%s1 + $0x1d4] sm:$0xf]
        %v421 = vld [vmem:[%s1 + $0x1d8] sm:$0xf]
        %v422 = vld [vmem:[%s1 + $0x1dc] sm:$0xf]
        %v423 = vld [vmem:[%s1 + $0x1e0] sm:$0xf]
        %v424 = vld [vmem:[%s1 + $0x1e4] sm:$0xf]
        %v425 = vld [vmem:[%s1 + $0x1e8] sm:$0xf]
        %v426 = vld [vmem:[%s1 + $0x1ec] sm:$0xf]
        %v427 = vld [vmem:[%s1 + $0x1f0] sm:$0xf]
        %v428 = vld [vmem:[%s1 + $0x1f4] sm:$0xf]
        %v429 = vld [vmem:[%s1 + $0x1f8] sm:$0xf]
        %v430 = vld [vmem:[%s1 + $0x1fc] sm:$0xf]
        %v431 = vld [vmem:[%s2] sm:$0x1]
        %v433 = vperm.slane %v431, 0
        %v563 = vunpack.c.l.b16 %v303
        %v564 = vunpack.c.l.b16 %v304
        %v565 = vunpack.c.l.b16 %v305
        %v566 = vunpack.c.l.b16 %v306
        %v567 = vunpack.c.l.b16 %v307
        %v568 = vunpack.c.l.b16 %v308
        %v569 = vunpack.c.l.b16 %v309
        %v570 = vunpack.c.l.b16 %v310
        %v571 = vunpack.c.l.b16 %v311
        %v572 = vunpack.c.l.b16 %v312
        %v573 = vunpack.c.l.b16 %v313
        %v574 = vunpack.c.l.b16 %v314
        %v575 = vunpack.c.l.b16 %v315
        %v576 = vunpack.c.l.b16 %v316
        %v577 = vunpack.c.l.b16 %v317
        %v578 = vunpack.c.l.b16 %v318
        %v579 = vunpack.c.l.b16 %v319
        %v580 = vunpack.c.l.b16 %v320
        %v581 = vunpack.c.l.b16 %v321
        %v582 = vunpack.c.l.b16 %v322
        %v583 = vunpack.c.l.b16 %v323
        %v584 = vunpack.c.l.b16 %v324
        %v585 = vunpack.c.l.b16 %v325
        %v586 = vunpack.c.l.b16 %v326
        %v587 = vunpack.c.l.b16 %v327
        %v588 = vunpack.c.l.b16 %v328
        %v589 = vunpack.c.l.b16 %v329
        %v590 = vunpack.c.l.b16 %v330
        %v591 = vunpack.c.l.b16 %v331
        %v592 = vunpack.c.l.b16 %v332
        %v593 = vunpack.c.l.b16 %v333
        %v594 = vunpack.c.l.b16 %v334
        %v595 = vunpack.c.l.b16 %v335
        %v596 = vunpack.c.l.b16 %v336
        %v597 = vunpack.c.l.b16 %v337
        %v598 = vunpack.c.l.b16 %v338
        %v599 = vunpack.c.l.b16 %v339
        %v600 = vunpack.c.l.b16 %v340
        %v601 = vunpack.c.l.b16 %v341
        %v602 = vunpack.c.l.b16 %v342
        %v603 = vunpack.c.l.b16 %v343
        %v604 = vunpack.c.l.b16 %v344
        %v605 = vunpack.c.l.b16 %v345
        %v606 = vunpack.c.l.b16 %v346
        %v607 = vunpack.c.l.b16 %v347
        %v608 = vunpack.c.l.b16 %v348
        %v609 = vunpack.c.l.b16 %v349
        %v610 = vunpack.c.l.b16 %v350
        %v611 = vunpack.c.l.b16 %v351
        %v612 = vunpack.c.l.b16 %v352
        %v613 = vunpack.c.l.b16 %v353
        %v614 = vunpack.c.l.b16 %v354
        %v615 = vunpack.c.l.b16 %v355
        %v616 = vunpack.c.l.b16 %v356
        %v617 = vunpack.c.l.b16 %v357
        %v618 = vunpack.c.l.b16 %v358
        %v619 = vunpack.c.l.b16 %v359
        %v620 = vunpack.c.l.b16 %v360
        %v621 = vunpack.c.l.b16 %v361
        %v622 = vunpack.c.l.b16 %v362
        %v623 = vunpack.c.l.b16 %v363
        %v624 = vunpack.c.l.b16 %v364
        %v625 = vunpack.c.l.b16 %v365
        %v626 = vunpack.c.l.b16 %v366
        %v627 = vunpack.c.l.b16 %v367
        %v628 = vunpack.c.l.b16 %v368
        %v629 = vunpack.c.l.b16 %v369
        %v630 = vunpack.c.l.b16 %v370
        %v631 = vunpack.c.l.b16 %v371
        %v632 = vunpack.c.l.b16 %v372
        %v633 = vunpack.c.l.b16 %v373
        %v634 = vunpack.c.l.b16 %v374
        %v635 = vunpack.c.l.b16 %v375
        %v636 = vunpack.c.l.b16 %v376
        %v637 = vunpack.c.l.b16 %v377
        %v638 = vunpack.c.l.b16 %v378
        %v639 = vunpack.c.l.b16 %v379
        %v640 = vunpack.c.l.b16 %v380
        %v641 = vunpack.c.l.b16 %v381
        %v642 = vunpack.c.l.b16 %v382
        %v643 = vunpack.c.l.b16 %v383
        %v644 = vunpack.c.l.b16 %v384
        %v645 = vunpack.c.l.b16 %v385
        %v646 = vunpack.c.l.b16 %v386
        %v647 = vunpack.c.l.b16 %v387
        %v648 = vunpack.c.l.b16 %v388
        %v649 = vunpack.c.l.b16 %v389
        %v650 = vunpack.c.l.b16 %v390
        %v651 = vunpack.c.l.b16 %v391
        %v652 = vunpack.c.l.b16 %v392
        %v653 = vunpack.c.l.b16 %v393
        %v654 = vunpack.c.l.b16 %v394
        %v655 = vunpack.c.l.b16 %v395
        %v656 = vunpack.c.l.b16 %v396
        %v657 = vunpack.c.l.b16 %v397
        %v658 = vunpack.c.l.b16 %v398
        %v659 = vunpack.c.l.b16 %v399
        %v660 = vunpack.c.l.b16 %v400
        %v661 = vunpack.c.l.b16 %v401
        %v662 = vunpack.c.l.b16 %v402
        %v663 = vunpack.c.l.b16 %v403
        %v664 = vunpack.c.l.b16 %v404
        %v665 = vunpack.c.l.b16 %v405
        %v666 = vunpack.c.l.b16 %v406
        %v667 = vunpack.c.l.b16 %v407
        %v668 = vunpack.c.l.b16 %v408
        %v669 = vunpack.c.l.b16 %v409
        %v670 = vunpack.c.l.b16 %v410
        %v671 = vunpack.c.l.b16 %v411
        %v672 = vunpack.c.l.b16 %v412
        %v673 = vunpack.c.l.b16 %v413
        %v674 = vunpack.c.l.b16 %v414
        %v675 = vunpack.c.l.b16 %v415
        %v676 = vunpack.c.l.b16 %v416
        %v677 = vunpack.c.l.b16 %v417
        %v678 = vunpack.c.l.b16 %v418
        %v679 = vunpack.c.l.b16 %v419
        %v680 = vunpack.c.l.b16 %v420
        %v681 = vunpack.c.l.b16 %v421
        %v682 = vunpack.c.l.b16 %v422
        %v683 = vunpack.c.l.b16 %v423
        %v684 = vunpack.c.l.b16 %v424
        %v685 = vunpack.c.l.b16 %v425
        %v686 = vunpack.c.l.b16 %v426
        %v687 = vunpack.c.l.b16 %v427
        %v688 = vunpack.c.l.b16 %v428
        %v689 = vunpack.c.l.b16 %v429
        %v690 = vunpack.c.l.b16 %v430
        %v691 = vpack.c.b16 %v564, %v563
        %v692 = vpack.c.b16 %v566, %v565
        %v693 = vpack.c.b16 %v568, %v567
        %v694 = vpack.c.b16 %v570, %v569
        %v695 = vpack.c.b16 %v572, %v571
        %v696 = vpack.c.b16 %v574, %v573
        %v697 = vpack.c.b16 %v576, %v575
        %v698 = vpack.c.b16 %v578, %v577
        %v699 = vpack.c.b16 %v580, %v579
        %v700 = vpack.c.b16 %v582, %v581
        %v701 = vpack.c.b16 %v584, %v583
        %v702 = vpack.c.b16 %v586, %v585
        %v703 = vpack.c.b16 %v588, %v587
        %v704 = vpack.c.b16 %v590, %v589
        %v705 = vpack.c.b16 %v592, %v591
        %v706 = vpack.c.b16 %v594, %v593
        %v707 = vpack.c.b16 %v596, %v595
        %v708 = vpack.c.b16 %v598, %v597
        %v709 = vpack.c.b16 %v600, %v599
        %v710 = vpack.c.b16 %v602, %v601
        %v711 = vpack.c.b16 %v604, %v603
        %v712 = vpack.c.b16 %v606, %v605
        %v713 = vpack.c.b16 %v608, %v607
        %v714 = vpack.c.b16 %v610, %v609
        %v715 = vpack.c.b16 %v612, %v611
        %v716 = vpack.c.b16 %v614, %v613
        %v717 = vpack.c.b16 %v616, %v615
        %v718 = vpack.c.b16 %v618, %v617
        %v719 = vpack.c.b16 %v620, %v619
        %v720 = vpack.c.b16 %v622, %v621
        %v721 = vpack.c.b16 %v624, %v623
        %v722 = vpack.c.b16 %v626, %v625
        %v723 = vpack.c.b16 %v628, %v627
        %v724 = vpack.c.b16 %v630, %v629
        %v725 = vpack.c.b16 %v632, %v631
        %v726 = vpack.c.b16 %v634, %v633
        %v727 = vpack.c.b16 %v636, %v635
        %v728 = vpack.c.b16 %v638, %v637
        %v729 = vpack.c.b16 %v640, %v639
        %v730 = vpack.c.b16 %v642, %v641
        %v731 = vpack.c.b16 %v644, %v643
        %v732 = vpack.c.b16 %v646, %v645
        %v733 = vpack.c.b16 %v648, %v647
        %v734 = vpack.c.b16 %v650, %v649
        %v735 = vpack.c.b16 %v652, %v651
        %v736 = vpack.c.b16 %v654, %v653
        %v737 = vpack.c.b16 %v656, %v655
        %v738 = vpack.c.b16 %v658, %v657
        %v739 = vpack.c.b16 %v660, %v659
        %v740 = vpack.c.b16 %v662, %v661
        %v741 = vpack.c.b16 %v664, %v663
        %v742 = vpack.c.b16 %v666, %v665
        %v743 = vpack.c.b16 %v668, %v667
        %v744 = vpack.c.b16 %v670, %v669
        %v745 = vpack.c.b16 %v672, %v671
        %v746 = vpack.c.b16 %v674, %v673
        %v747 = vpack.c.b16 %v676, %v675
        %v748 = vpack.c.b16 %v678, %v677
        %v749 = vpack.c.b16 %v680, %v679
        %v750 = vpack.c.b16 %v682, %v681
        %v751 = vpack.c.b16 %v684, %v683
        %v752 = vpack.c.b16 %v686, %v685
        %v753 = vpack.c.b16 %v688, %v687
        %v754 = vpack.c.b16 %v690, %v689
        %819 = vmatpush.bf16.msra.mxu0 %v698
        %820 = vmatpush.bf16.msra.mxu0 %v697
        %821 = vmatpush.bf16.msra.mxu0 %v696
        %822 = vmatpush.bf16.msra.mxu0 %v695
        %823 = vmatpush.bf16.msra.mxu0 %v694
        %824 = vmatpush.bf16.msra.mxu0 %v693
        %825 = vmatpush.bf16.msra.mxu0 %v692
        %826 = vmatpush.bf16.msra.mxu0 %v691
        %827 = vmatmul.bf16.gmra.mxu0 %v287
        %v828 = vpop.f32.mrf.mxu0
        %v829 = vadd.f32 %v433, %v828
        %v830 = vpop.f32.mrf.mxu0
        %v831 = vadd.f32 %v433, %v830
        %832 = vmatmul.bf16.gmra.mxu0 %v295
        %v833 = vpop.f32.mrf.mxu0
        %v834 = vadd.f32 %v433, %v833
        %v835 = vpop.f32.mrf.mxu0
        %v836 = vadd.f32 %v433, %v835
        %837 = vdwg.mxu0
        %838 = vmatpush.bf16.msra.mxu0 %v706
        %839 = vmatpush.bf16.msra.mxu0 %v705
        %840 = vmatpush.bf16.msra.mxu0 %v704
        %841 = vmatpush.bf16.msra.mxu0 %v703
        %842 = vmatpush.bf16.msra.mxu0 %v702
        %843 = vmatpush.bf16.msra.mxu0 %v701
        %844 = vmatpush.bf16.msra.mxu0 %v700
        %845 = vmatpush.bf16.msra.mxu0 %v699
        %846 = vmatmul.bf16.gmra.mxu0 %v288
        %v847 = vpop.f32.mrf.mxu0
        %v848 = vadd.f32 %v829, %v847
        %v849 = vpop.f32.mrf.mxu0
        %v850 = vadd.f32 %v831, %v849
        %851 = vmatmul.bf16.gmra.mxu0 %v296
        %v852 = vpop.f32.mrf.mxu0
        %v853 = vadd.f32 %v834, %v852
        %v854 = vpop.f32.mrf.mxu0
        %v855 = vadd.f32 %v836, %v854
        %856 = vdwg.mxu0
        %857 = vmatpush.bf16.msra.mxu0 %v714
        %858 = vmatpush.bf16.msra.mxu0 %v713
        %859 = vmatpush.bf16.msra.mxu0 %v712
        %860 = vmatpush.bf16.msra.mxu0 %v711
        %861 = vmatpush.bf16.msra.mxu0 %v710
        %862 = vmatpush.bf16.msra.mxu0 %v709
        %863 = vmatpush.bf16.msra.mxu0 %v708
        %864 = vmatpush.bf16.msra.mxu0 %v707
        %865 = vmatmul.bf16.gmra.mxu0 %v289
        %v866 = vpop.f32.mrf.mxu0
        %v867 = vadd.f32 %v848, %v866
        %v868 = vpop.f32.mrf.mxu0
        %v869 = vadd.f32 %v850, %v868
        %870 = vmatmul.bf16.gmra.mxu0 %v297
        %v871 = vpop.f32.mrf.mxu0
        %v872 = vadd.f32 %v853, %v871
        %v873 = vpop.f32.mrf.mxu0
        %v874 = vadd.f32 %v855, %v873
        %875 = vdwg.mxu0
        %876 = vmatpush.bf16.msra.mxu0 %v722
        %877 = vmatpush.bf16.msra.mxu0 %v721
        %878 = vmatpush.bf16.msra.mxu0 %v720
        %879 = vmatpush.bf16.msra.mxu0 %v719
        %880 = vmatpush.bf16.msra.mxu0 %v718
        %881 = vmatpush.bf16.msra.mxu0 %v717
        %882 = vmatpush.bf16.msra.mxu0 %v716
        %883 = vmatpush.bf16.msra.mxu0 %v715
        %884 = vmatmul.bf16.gmra.mxu0 %v290
        %v885 = vpop.f32.mrf.mxu0
        %v886 = vadd.f32 %v867, %v885
        %v887 = vpop.f32.mrf.mxu0
        %v888 = vadd.f32 %v869, %v887
        %889 = vmatmul.bf16.gmra.mxu0 %v298
        %v890 = vpop.f32.mrf.mxu0
        %v891 = vadd.f32 %v872, %v890
        %v892 = vpop.f32.mrf.mxu0
        %v893 = vadd.f32 %v874, %v892
        %894 = vdwg.mxu0
        %895 = vmatpush.bf16.msra.mxu0 %v730
        %896 = vmatpush.bf16.msra.mxu0 %v729
        %897 = vmatpush.bf16.msra.mxu0 %v728
        %898 = vmatpush.bf16.msra.mxu0 %v727
        %899 = vmatpush.bf16.msra.mxu0 %v726
        %900 = vmatpush.bf16.msra.mxu0 %v725
        %901 = vmatpush.bf16.msra.mxu0 %v724
        %902 = vmatpush.bf16.msra.mxu0 %v723
        %903 = vmatmul.bf16.gmra.mxu0 %v291
        %v904 = vpop.f32.mrf.mxu0
        %v905 = vadd.f32 %v886, %v904
        %v906 = vpop.f32.mrf.mxu0
        %v907 = vadd.f32 %v888, %v906
        %908 = vmatmul.bf16.gmra.mxu0 %v299
        %v909 = vpop.f32.mrf.mxu0
        %v910 = vadd.f32 %v891, %v909
        %v911 = vpop.f32.mrf.mxu0
        %v912 = vadd.f32 %v893, %v911
        %913 = vdwg.mxu0
        %914 = vmatpush.bf16.msra.mxu0 %v738
        %915 = vmatpush.bf16.msra.mxu0 %v737
        %916 = vmatpush.bf16.msra.mxu0 %v736
        %917 = vmatpush.bf16.msra.mxu0 %v735
        %918 = vmatpush.bf16.msra.mxu0 %v734
        %919 = vmatpush.bf16.msra.mxu0 %v733
        %920 = vmatpush.bf16.msra.mxu0 %v732
        %921 = vmatpush.bf16.msra.mxu0 %v731
        %922 = vmatmul.bf16.gmra.mxu0 %v292
        %v923 = vpop.f32.mrf.mxu0
        %v924 = vadd.f32 %v905, %v923
        %v925 = vpop.f32.mrf.mxu0
        %v926 = vadd.f32 %v907, %v925
        %927 = vmatmul.bf16.gmra.mxu0 %v300
        %v928 = vpop.f32.mrf.mxu0
        %v929 = vadd.f32 %v910, %v928
        %v930 = vpop.f32.mrf.mxu0
        %v931 = vadd.f32 %v912, %v930
        %932 = vdwg.mxu0
        %933 = vmatpush.bf16.msra.mxu0 %v746
        %934 = vmatpush.bf16.msra.mxu0 %v745
        %935 = vmatpush.bf16.msra.mxu0 %v744
        %936 = vmatpush.bf16.msra.mxu0 %v743
        %937 = vmatpush.bf16.msra.mxu0 %v742
        %938 = vmatpush.bf16.msra.mxu0 %v741
        %939 = vmatpush.bf16.msra.mxu0 %v740
        %940 = vmatpush.bf16.msra.mxu0 %v739
        %941 = vmatmul.bf16.gmra.mxu0 %v293
        %v942 = vpop.f32.mrf.mxu0
        %v943 = vadd.f32 %v924, %v942
        %v944 = vpop.f32.mrf.mxu0
        %v945 = vadd.f32 %v926, %v944
        %946 = vmatmul.bf16.gmra.mxu0 %v301
        %v947 = vpop.f32.mrf.mxu0
        %v948 = vadd.f32 %v929, %v947
        %v949 = vpop.f32.mrf.mxu0
        %v950 = vadd.f32 %v931, %v949
        %951 = vdwg.mxu0
        %952 = vmatpush.bf16.msra.mxu0 %v754
        %953 = vmatpush.bf16.msra.mxu0 %v753
        %954 = vmatpush.bf16.msra.mxu0 %v752
        %955 = vmatpush.bf16.msra.mxu0 %v751
        %956 = vmatpush.bf16.msra.mxu0 %v750
        %957 = vmatpush.bf16.msra.mxu0 %v749
        %958 = vmatpush.bf16.msra.mxu0 %v748
        %959 = vmatpush.bf16.msra.mxu0 %v747
        %960 = vmatmul.bf16.gmra.mxu0 %v294
        %v961 = vpop.f32.mrf.mxu0
        %v962 = vadd.f32 %v943, %v961
        %v963 = vpop.f32.mrf.mxu0
        %v964 = vadd.f32 %v945, %v963
        %965 = vmatmul.bf16.gmra.mxu0 %v302
        %v966 = vpop.f32.mrf.mxu0
        %v967 = vadd.f32 %v948, %v966
        %v968 = vpop.f32.mrf.mxu0
        %v969 = vadd.f32 %v950, %v968
        %970 = vdwg.mxu0
        %v971 = vmax.f32 %v962, 0.0
        %v972 = vmax.f32 %v964, 0.0
        %v973 = vmax.f32 %v967, 0.0
        %v974 = vmax.f32 %v969, 0.0
        %v975 = vpack.c.bf16 %v972, %v971
        %v976 = vpack.c.bf16 %v974, %v973
        %v977 = vld [vmem:[%s3] sm:$0xf]
        %v978 = vld [vmem:[%s3 + $0x4] sm:$0xf]
        %v979 = vld [vmem:[%s3 + $0x8] sm:$0xf]
        %v980 = vld [vmem:[%s3 + $0xc] sm:$0xf]
        %v981 = vld [vmem:[%s4] sm:$0x1]
        %v983 = vperm.slane %v981, 0
        %v989 = vunpack.c.l.b16 %v977
        %v990 = vunpack.c.l.b16 %v978
        %v991 = vunpack.c.l.b16 %v979
        %v992 = vunpack.c.l.b16 %v980
        %v993 = vpack.c.b16 %v990, %v989
        %v994 = vpack.c.b16 %v992, %v991
        %vm997 = vcmask 261120
        %v999 = vsel %vm997, %v975, 0
        %v1002 = vsel %vm997, %v976, 0
        %1004 = vmatpush.bf16.msra.mxu0 0
        %1005 = vmatpush.bf16.msra.mxu0 0
        %1006 = vmatpush.bf16.msra.mxu0 0
        %1007 = vmatpush.bf16.msra.mxu0 0
        %1008 = vmatpush.bf16.msra.mxu0 0
        %1009 = vmatpush.bf16.msra.mxu0 0
        %1010 = vmatpush.bf16.msra.mxu0 %v994
        %1011 = vmatpush.bf16.msra.mxu0 %v993
        %1012 = vmatmul.bf16.gmra.mxu0 %v999
        %v1013 = vpop.f32.mrf.mxu0
        %v1014 = vadd.f32 %v983, %v1013
        %v1015 = vpop.f32.mrf.mxu0
        %v1016 = vadd.f32 %v983, %v1015
        %1017 = vmatmul.bf16.gmra.mxu0 %v1002
        %v1018 = vpop.f32.mrf.mxu0
        %v1019 = vadd.f32 %v983, %v1018
        %v1020 = vpop.f32.mrf.mxu0
        %v1021 = vadd.f32 %v983, %v1020
        %1022 = vdwg.mxu0
        %vm1023 = vcmask 15360
        %1024 = vst.msk [vmem:[%s231] sm:$0xff] %vm1023, %v1014
        %1025 = vst.msk [vmem:[%s231 + $0x8] sm:$0xff] %vm1023, %v1016
        %1026 = vst.msk [vmem:[%s231 + $0x10] sm:$0xff] %vm1023, %v1019
        %1027 = vst.msk [vmem:[%s231 + $0x18] sm:$0xff] %vm1023, %v1021
        %s1028 = sand.u32 %s134, 1
        %s1029 = sand.u32 %s134, 1
        %s1030 = smul.addr %s1029, 32
        %s1031 = scalar_lea.vmem [#allocation2], %s1030
        // Predicated region
        $region41: #{tpu_custom_call.1} parent=39 // pred_check
          %p1032 = pneg %p144
        $region42: #{tpu_custom_call.1} parent=39 // pred_check_branch
          %1034 = sbr.rel (%p1032) target = $region44
        $region43: #{tpu_custom_call.1} parent=39 // pred_region
          %s1035 = smul.u32 4, %s16
          %s1036 = ssub.s32 7, %s1035
          %p1037 = scmp.lt.s32.totalorder %s1036, 4
          %s1038 = scalar_select %p1037, %s1036, 4
          %s1039 = smul.u32 8, %s1038
          %p1040 = scmp.ne.s32.totalorder 0, %s1039
          %s1041 = smul.addr %s1035, 8
          %s1042 = scalar_lea.vmem %s5, %s1041
          // Predicated region
          $region45: #{tpu_custom_call.1} parent=43 // pred_check
            %p1043 = pneg %p1040
          $region46: #{tpu_custom_call.1} parent=43 // pred_check_branch
            %1045 = sbr.rel (%p1043) target = $region48
          $region47: #{tpu_custom_call.1} parent=43 // pred_region
            // Predicated region
            $region49: #{tpu_custom_call.1} parent=47 // pred_check
              _
            $region50: #{tpu_custom_call.1} parent=47 // pred_check_branch
              %1047 = sbr.rel (0) target = $region52
            $region51: #{tpu_custom_call.1} parent=47 // pred_region
              // Predicated region
              $region71: #{tpu_custom_call.1} parent=51 // pred_check
                _
              $region72: #{tpu_custom_call.1} parent=51 // pred_check_branch
                %1103 = sbr.rel (0) target = $region74
              $region73: #{tpu_custom_call.1} parent=51 // pred_region
                %s1104 = sshrl.u32 %s1038, 2
                // While loop
                $region75: #{tpu_custom_call.1} parent=73 // loop_pre_header
                  _
                $region76: #{tpu_custom_call.1} parent=73 // loop_header
                  %s1106 = sphi 0, %s1108
                  %p1107 = scmp.ge.s32.totalorder %s1106, %s1104
                  %s1111 = sphi 0, %s1124
                  %s1112 = sphi %s1031, %s1127
                  %s1113 = sphi %s1042, %s1128
                $region77: #{tpu_custom_call.1} parent=73 // loop_header_branch
                  %1110 = sbr.rel (%p1107) target = $region81
                $region78: #{tpu_custom_call.1} parent=73 // loop_body
                  %v1114 = vld [vmem:[%s1112] sm:$0xff]
                  %1115 = vst [vmem:[%s1113] sm:$0xff] %v1114
                  %v1116 = vld [vmem:[%s1112 + $0x8] sm:$0xff]
                  %1117 = vst [vmem:[%s1113 + $0x8] sm:$0xff] %v1116
                  %v1118 = vld [vmem:[%s1112 + $0x10] sm:$0xff]
                  %1119 = vst [vmem:[%s1113 + $0x10] sm:$0xff] %v1118
                  %v1120 = vld [vmem:[%s1112 + $0x18] sm:$0xff]
                  %1121 = vst [vmem:[%s1113 + $0x18] sm:$0xff] %v1120
                  %s1122 = sadd.s32 1, %s1111
                  %p1123 = scmp.ge.s32.totalorder %s1122, %s1104
                  %s1124 = scalar_select %p1123, 0, %s1122
                  %s1125 = smul.u32 %s1124, 32
                  %s1126 = smul.u32 %s1124, 32
                  %s1127 = scalar_lea.vmem %s1031, %s1125 [#allocation2]
                  %s1128 = scalar_lea.vmem %s1042, %s1126
                $region79: #{tpu_custom_call.1} parent=73 // loop_footer
                  %s1108 = sadd.s32 %s1106, 1
                $region80: #{tpu_custom_call.1} parent=73 // loop_footer_branch
                  %1105 = sbr.rel target = $region76
                $region81: #{tpu_custom_call.1} parent=73 // loop_exit
                  _
                %s1129 = sshrl.u32 %s1038, 2
                %s1130 = sand.u32 %s1038, 3
                %s1131 = smul.u32 %s1129, 4
                %s1132 = smul.u32 8, %s1131
                %s1133 = scalar_lea.vmem %s1031, %s1132 [#allocation2]
                %s1134 = smul.u32 8, %s1131
                %s1135 = scalar_lea.vmem %s1042, %s1134
                // While loop
                $region82: #{tpu_custom_call.1} parent=73 // loop_pre_header
                  _
                $region83: #{tpu_custom_call.1} parent=73 // loop_header
                  %s1137 = sphi 0, %s1139
                  %p1138 = scmp.ge.s32.totalorder %s1137, %s1130
                  %s1142 = sphi 0, %s1149
                  %s1143 = sphi %s1133, %s1152
                  %s1144 = sphi %s1135, %s1153
                $region84: #{tpu_custom_call.1} parent=73 // loop_header_branch
                  %1141 = sbr.rel (%p1138) target = $region88
                $region85: #{tpu_custom_call.1} parent=73 // loop_body
                  %v1145 = vld [vmem:[%s1143] sm:$0xff]
                  %1146 = vst [vmem:[%s1144] sm:$0xff] %v1145
                  %s1147 = sadd.s32 1, %s1142
                  %p1148 = scmp.ge.s32.totalorder %s1147, %s1130
                  %s1149 = scalar_select %p1148, 0, %s1147
                  %s1150 = smul.u32 %s1149, 8
                  %s1151 = smul.u32 %s1149, 8
                  %s1152 = scalar_lea.vmem %s1133, %s1150 [#allocation2]
                  %s1153 = scalar_lea.vmem %s1135, %s1151
                $region86: #{tpu_custom_call.1} parent=73 // loop_footer
                  %s1139 = sadd.s32 %s1137, 1
                $region87: #{tpu_custom_call.1} parent=73 // loop_footer_branch
                  %1136 = sbr.rel target = $region83
                $region88: #{tpu_custom_call.1} parent=73 // loop_exit
                  _
              $region74: #{tpu_custom_call.1} parent=51 // pred_fallthru
                _
              // Predicated region
              $region89: #{tpu_custom_call.1} parent=51 // pred_check
                _
              $region90: #{tpu_custom_call.1} parent=51 // pred_check_branch
                %1155 = sbr.rel target = $region92
              $region91: #{tpu_custom_call.1} parent=51 // pred_region
                _
              $region92: #{tpu_custom_call.1} parent=51 // pred_fallthru
                _
            $region52: #{tpu_custom_call.1} parent=47 // pred_fallthru
              _
            // Predicated region
            $region53: #{tpu_custom_call.1} parent=47 // pred_check
              _
            $region54: #{tpu_custom_call.1} parent=47 // pred_check_branch
              %1049 = sbr.rel target = $region56
            $region55: #{tpu_custom_call.1} parent=47 // pred_region
              %s1051 = ssub.s32 256, 1
              %s1052 = sshrl.u32 %s1038, 2
              // While loop
              $region57: #{tpu_custom_call.1} parent=55 // loop_pre_header
                _
              $region58: #{tpu_custom_call.1} parent=55 // loop_header
                %s1054 = sphi 0, %s1056
                %p1055 = scmp.ge.s32.totalorder %s1054, %s1052
                %s1059 = sphi 0, %s1072
                %s1060 = sphi %s1031, %s1075
                %s1061 = sphi %s1042, %s1076
              $region59: #{tpu_custom_call.1} parent=55 // loop_header_branch
                %1058 = sbr.rel (%p1055) target = $region63
              $region60: #{tpu_custom_call.1} parent=55 // loop_body
                %v1062 = vld [vmem:[%s1060] sm:%s1051]
                %1063 = vst [vmem:[%s1061] sm:%s1051] %v1062
                %v1064 = vld [vmem:[%s1060 + $0x8] sm:%s1051]
                %1065 = vst [vmem:[%s1061 + $0x8] sm:%s1051] %v1064
                %v1066 = vld [vmem:[%s1060 + $0x10] sm:%s1051]
                %1067 = vst [vmem:[%s1061 + $0x10] sm:%s1051] %v1066
                %v1068 = vld [vmem:[%s1060 + $0x18] sm:%s1051]
                %1069 = vst [vmem:[%s1061 + $0x18] sm:%s1051] %v1068
                %s1070 = sadd.s32 1, %s1059
                %p1071 = scmp.ge.s32.totalorder %s1070, %s1052
                %s1072 = scalar_select %p1071, 0, %s1070
                %s1073 = smul.u32 %s1072, 32
                %s1074 = smul.u32 %s1072, 32
                %s1075 = scalar_lea.vmem %s1031, %s1073 [#allocation2]
                %s1076 = scalar_lea.vmem %s1042, %s1074
              $region61: #{tpu_custom_call.1} parent=55 // loop_footer
                %s1056 = sadd.s32 %s1054, 1
              $region62: #{tpu_custom_call.1} parent=55 // loop_footer_branch
                %1053 = sbr.rel target = $region58
              $region63: #{tpu_custom_call.1} parent=55 // loop_exit
                _
              %s1077 = sshrl.u32 %s1038, 2
              %s1078 = sand.u32 %s1038, 3
              %s1079 = smul.u32 %s1077, 4
              %s1080 = smul.u32 8, %s1079
              %s1081 = scalar_lea.vmem %s1031, %s1080 [#allocation2]
              %s1082 = smul.u32 8, %s1079
              %s1083 = scalar_lea.vmem %s1042, %s1082
              // While loop
              $region64: #{tpu_custom_call.1} parent=55 // loop_pre_header
                _
              $region65: #{tpu_custom_call.1} parent=55 // loop_header
                %s1085 = sphi 0, %s1087
                %p1086 = scmp.ge.s32.totalorder %s1085, %s1078
                %s1090 = sphi 0, %s1097
                %s1091 = sphi %s1081, %s1100
                %s1092 = sphi %s1083, %s1101
              $region66: #{tpu_custom_call.1} parent=55 // loop_header_branch
                %1089 = sbr.rel (%p1086) target = $region70
              $region67: #{tpu_custom_call.1} parent=55 // loop_body
                %v1093 = vld [vmem:[%s1091] sm:%s1051]
                %1094 = vst [vmem:[%s1092] sm:%s1051] %v1093
                %s1095 = sadd.s32 1, %s1090
                %p1096 = scmp.ge.s32.totalorder %s1095, %s1078
                %s1097 = scalar_select %p1096, 0, %s1095
                %s1098 = smul.u32 %s1097, 8
                %s1099 = smul.u32 %s1097, 8
                %s1100 = scalar_lea.vmem %s1081, %s1098 [#allocation2]
                %s1101 = scalar_lea.vmem %s1083, %s1099
              $region68: #{tpu_custom_call.1} parent=55 // loop_footer
                %s1087 = sadd.s32 %s1085, 1
              $region69: #{tpu_custom_call.1} parent=55 // loop_footer_branch
                %1084 = sbr.rel target = $region65
              $region70: #{tpu_custom_call.1} parent=55 // loop_exit
                _
            $region56: #{tpu_custom_call.1} parent=47 // pred_fallthru
              _
          $region48: #{tpu_custom_call.1} parent=43 // pred_fallthru
            _
          %1156 = vnop
        $region44: #{tpu_custom_call.1} parent=39 // pred_fallthru
          _
      $region40: #{tpu_custom_call.1} parent=5 // pred_fallthru
        _
      %p1157 = scmp.le.s32.totalorder 2, %s11
      // Predicated region
      $region93: #{tpu_custom_call.1} parent=5 // pred_check
        %p1158 = pneg %p1157
      $region94: #{tpu_custom_call.1} parent=5 // pred_check_branch
        %1160 = sbr.rel (%p1158) target = $region96
      $region95: #{tpu_custom_call.1} parent=5 // pred_region
        %s1161 = ssub.s32 %s11, 2
        // Predicated region
        $region97: #{tpu_custom_call.1} parent=95 // pred_check
          %p1162 = pneg %p150
        $region98: #{tpu_custom_call.1} parent=95 // pred_check_branch
          %1164 = sbr.rel (%p1162) target = $region100
        $region99: #{tpu_custom_call.1} parent=95 // pred_region
          %s1165 = sand.u32 %s135, 1
          %s1166 = sand.u32 %s135, 1
          %s1167 = smul.addr %s1166, 32
          %s1168 = scalar_lea.vmem [#allocation2], %s1167
        $region100: #{tpu_custom_call.1} parent=95 // pred_fallthru
          _
      $region96: #{tpu_custom_call.1} parent=5 // pred_fallthru
        _
    $region6: #{tpu_custom_call.1} parent=1 // loop_footer
      %s15 = sadd.s32 1, %s11
    $region7: #{tpu_custom_call.1} parent=1 // loop_footer_branch
      %10 = sbr.rel target = $region3
    $region8: #{tpu_custom_call.1} parent=1 // loop_exit
      _

</llo_original>
